<compile_context>
chip_gen: v7x
topology: tpu7x:2x2x1
jax: 0.10.0
libtpu: 0.0.40
codegen_flags: <defaults>
</compile_context>

<pallas_src>
import jax
import jax.numpy as jnp
import numpy as np
from jax.experimental import pallas as pl
from jax.experimental.pallas import tpu as pltpu

CUT_SIZE = 8
CUTN = 4
NOISE_FAC = 0.1


def _make_cutouts_kernel(x_ref, noise_ref, facs_ref, o_ref):
    # x_ref:     (kh*kw, C*cs*cs)  pooling phases on sublanes, features on lanes
    # noise_ref: (cutn,  C*cs*cs)  per-cutout gaussian noise (lane-dense)
    # facs_ref:  (cutn, 1)         per-cutout noise factors
    # o_ref:     (cutn,  C*cs*cs)  lane-dense output slab
    x = x_ref[...]
    avg = jnp.mean(x, axis=0, keepdims=True)   # exact adaptive-avg bin means
    mx = jnp.max(x, axis=0, keepdims=True)     # adaptive-max bin maxima
    cut = (avg + mx) * 0.5                     # (1, C*cs*cs)
    # All cutn cutouts are identical (augmentations omitted) -> broadcast + noise.
    o_ref[...] = cut + facs_ref[...] * noise_ref[...]


def make_cutouts(x, facs, noise, cut_size=CUT_SIZE, cutn=CUTN):
    """x: (B, C, H, W) f32 (B must be 1 to match torch broadcasting of facs);
    facs: (cutn,) f32; noise: (cutn*B, C, cut_size, cut_size) f32."""
    B, C, H, W = x.shape
    assert B == 1, "MakeCutouts.forward assumes batch=1 (facs broadcasting)"
    cs = cut_size
    assert H % cs == 0 and W % cs == 0, "phase-pooling path requires exact bins"
    kh, kw = H // cs, W // cs
    feat = C * cs * cs

    # Layout plumbing (wrapper-side) so the kernel sees lane-dense data:
    #   x[0, c, i*kh+di, j*kw+dj] -> x_r[di*kw+dj, c*cs*cs + i*cs + j]
    x_r = (x.reshape(C, cs, kh, cs, kw)
             .transpose(2, 4, 0, 1, 3)
             .reshape(kh * kw, feat))
    noise_r = noise.reshape(cutn * B, feat)
    facs_r = facs.reshape(cutn, 1)

    out_flat = pl.pallas_call(
        _make_cutouts_kernel,
        out_shape=jax.ShapeDtypeStruct((cutn * B, feat), x.dtype),
        in_specs=[
            pl.BlockSpec(memory_space=pltpu.MemorySpace.VMEM),
            pl.BlockSpec(memory_space=pltpu.MemorySpace.VMEM),
            pl.BlockSpec(memory_space=pltpu.MemorySpace.VMEM),
        ],
        out_specs=pl.BlockSpec(memory_space=pltpu.MemorySpace.VMEM),
    )(x_r, noise_r, facs_r)

    return out_flat.reshape(cutn * B, C, cs, cs)


def _bin_bounds(idx, in_size, out_size):
    # PyTorch adaptive pooling bin: [floor(i*H/out), ceil((i+1)*H/out))
    start = (idx * in_size) // out_size
    end = -(-((idx + 1) * in_size) // out_size)
    return start, end


def _ref_forward(x, facs, noise, cut_size, cutn):
    """Pure-JAX reference of the same forward semantics (PyTorch adaptive pools)."""
    B, C, H, W = x.shape
    cs = cut_size
    rows = []
    for i in range(cs):
        h0, h1 = _bin_bounds(i, H, cs)
        cols = []
        for j in range(cs):
            w0, w1 = _bin_bounds(j, W, cs)
            win = x[:, :, h0:h1, w0:w1]
            cols.append((jnp.mean(win, axis=(2, 3)) + jnp.max(win, axis=(2, 3))) * 0.5)
        rows.append(jnp.stack(cols, axis=-1))
    cut = jnp.stack(rows, axis=-2)                     # (B, C, cs, cs)
    batch = jnp.tile(cut, (cutn, 1, 1, 1))             # cat of identical cutouts
    return batch + facs[:, None, None, None] * noise


if __name__ == "__main__":
    key = jax.random.PRNGKey(0)
    k1, k2, k3 = jax.random.split(key, 3)

    B, C, H, W = 1, 3, 16, 16
    x = jax.random.uniform(k1, (B, C, H, W), dtype=jnp.float32)
    # deterministic "random" noise parameters (replaces torch uniform_/randn_like)
    facs = jax.random.uniform(k2, (CUTN,), dtype=jnp.float32,
                              minval=0.0, maxval=NOISE_FAC)
    noise = jax.random.normal(k3, (CUTN * B, C, CUT_SIZE, CUT_SIZE),
                              dtype=jnp.float32)

    out = make_cutouts(x, facs, noise, CUT_SIZE, CUTN)
    out = jax.block_until_ready(out)

    ref = _ref_forward(x, facs, noise, CUT_SIZE, CUTN)
    assert out.shape == (CUTN * B, C, CUT_SIZE, CUT_SIZE)
    np.testing.assert_allclose(np.asarray(out), np.asarray(ref),
                               rtol=1e-5, atol=1e-5)
    print("KERNEL_OK")
</pallas_src>

<mosaic_0001>
module attributes {stable_mosaic.version = 11 : i64} {
  func.func @_make_cutouts_kernel(%arg0: memref<4x192xf32, #tpu.memory_space<vmem>>, %arg1: memref<4x192xf32, #tpu.memory_space<vmem>>, %arg2: memref<4x1xf32, #tpu.memory_space<vmem>>, %arg3: memref<4x192xf32, #tpu.memory_space<vmem>>) attributes {dimension_semantics = [], scalar_prefetch = 0 : i64, scratch_operands = 0 : i64, tpu.core_type = #tpu.core_type<tc>} {
    %c0 = arith.constant 0 : index
    %c0_0 = arith.constant 0 : index
    %0 = vector.load %arg0[%c0, %c0_0] : memref<4x192xf32, #tpu.memory_space<vmem>>, vector<4x192xf32>
    %cst = arith.constant dense<0.000000e+00> : vector<192xf32>
    %1 = vector.multi_reduction <add>, %0, %cst [0] : vector<4x192xf32> to vector<192xf32>
    %2 = vector.shape_cast %1 : vector<192xf32> to vector<1x192xf32>
    %cst_1 = arith.constant 4.000000e+00 : f32
    %3 = vector.broadcast %cst_1 : f32 to vector<1x192xf32>
    %4 = arith.divf %2, %3 : vector<1x192xf32>
    %cst_2 = arith.constant dense<0xFF800000> : vector<192xf32>
    %5 = vector.multi_reduction <maximumf>, %0, %cst_2 [0] : vector<4x192xf32> to vector<192xf32>
    %6 = vector.shape_cast %5 : vector<192xf32> to vector<1x192xf32>
    %7 = arith.addf %4, %6 : vector<1x192xf32>
    %cst_3 = arith.constant 5.000000e-01 : f32
    %8 = vector.broadcast %cst_3 : f32 to vector<1x192xf32>
    %9 = arith.mulf %7, %8 : vector<1x192xf32>
    %c0_4 = arith.constant 0 : index
    %c0_5 = arith.constant 0 : index
    %10 = vector.load %arg2[%c0_4, %c0_5] : memref<4x1xf32, #tpu.memory_space<vmem>>, vector<4x1xf32>
    %c0_6 = arith.constant 0 : index
    %c0_7 = arith.constant 0 : index
    %11 = vector.load %arg1[%c0_6, %c0_7] : memref<4x192xf32, #tpu.memory_space<vmem>>, vector<4x192xf32>
    %12 = vector.broadcast %10 : vector<4x1xf32> to vector<4x192xf32>
    %13 = arith.mulf %12, %11 : vector<4x192xf32>
    %14 = vector.broadcast %9 : vector<1x192xf32> to vector<4x192xf32>
    %15 = arith.addf %14, %13 : vector<4x192xf32>
    %c0_8 = arith.constant 0 : index
    %c0_9 = arith.constant 0 : index
    %16 = vector.load %arg3[%c0_8, %c0_9] : memref<4x192xf32, #tpu.memory_space<vmem>>, vector<4x192xf32>
    tpu.vector_store %arg3[%c0_8, %c0_9], %15 {strides = array<i32>} : memref<4x192xf32, #tpu.memory_space<vmem>>, vector<4x192xf32>,
    return
  }
}

</mosaic_0001>

<llo_original>
// kernel: tpu_custom_call.1
$region0: #{tpu_custom_call.1}
  #allocation0 [shape = 'u32[]', space=smem, size = 0x4, offset = 0x4, fixed_abs, tag = 'smem constant byte address 0x4 - core index']
  #allocation1 [shape = 'u32[144,128]{1,0:T(1,128)}', space=vmem, size = 0x12000, scoped, tag = 'internal scratch']
  %s0 = inlined_call_operand.hbm [shape: f32[4,192], index: 0, kind: input, shape index: {}]
  %s1 = inlined_call_operand.vmem [shape: f32[4,192], index: 1, kind: input, shape index: {}]
  %s2 = inlined_call_operand.vmem [shape: f32[4,1], index: 2, kind: input, shape index: {}]
  %s3 = inlined_call_operand.hbm [shape: f32[4,192], index: 3, kind: output, shape index: {}]
  %s4 = sld [smem:[#allocation0]]
  $region26: #{tpu_custom_call.1} parent=0
    _
  %s6 = ssub.s32 1, %s4
  %s7 = scalar_select 0, %s6, %s4
  $region1: #{tpu_custom_call.1} parent=0
    #allocation2 [shape = 'u8[4096]{0}', space=vmem, size = 0x1000, scoped, tag = 'input window, operand 0, single buffered']
    #allocation3 [shape = 's32[1]{0}', space=sflag, size = 0x4, scoped, tag = 'scoped memory for tpu_custom_call.1']
    #allocation4 [shape = 's32[1]{0}', space=sflag, size = 0x4, scoped, tag = 'scoped memory for tpu_custom_call.1']
    #allocation5 [shape = 'u8[4096]{0}', space=vmem, size = 0x1000, scoped, tag = 'output window, operand 0, single buffered']
    %8 = vsyncpa [#allocation3], 0
    %9 = vsyncpa [#allocation4], 0
    // Predicated region
    $region2: #{tpu_custom_call.1} parent=1 // pred_check
      _
    $region3: #{tpu_custom_call.1} parent=1 // pred_check_branch
      %11 = sbr.rel (0) target = $region5
    $region4: #{tpu_custom_call.1} parent=1 // pred_region
      %s13 = ssub.s32 128, 128
      %14 = vsyncadd [#allocation3], %s13
      %s16 = sshll.u32 [#allocation2], 4
      %s17 = int_to_ptr.vmem [resolvable:$true] %s16
      %19 = dma.hbm_to_vmem [thread:$0]  %s0, 128, %s17, [#allocation3]
    $region5: #{tpu_custom_call.1} parent=1 // pred_fallthru
      _
    // Predicated region
    $region6: #{tpu_custom_call.1} parent=1 // pred_check
      _
    $region7: #{tpu_custom_call.1} parent=1 // pred_check_branch
      %21 = sbr.rel (0) target = $region9
    $region8: #{tpu_custom_call.1} parent=1 // pred_region
      _
    $region9: #{tpu_custom_call.1} parent=1 // pred_fallthru
      _
    // Predicated region
    $region10: #{tpu_custom_call.1} parent=1 // pred_check
      _
    $region11: #{tpu_custom_call.1} parent=1 // pred_check_branch
      %23 = sbr.rel (0) target = $region13
    $region12: #{tpu_custom_call.1} parent=1 // pred_region
      _
    $region13: #{tpu_custom_call.1} parent=1 // pred_fallthru
      _
    // Predicated region
    $region14: #{tpu_custom_call.1} parent=1 // pred_check
      _
    $region15: #{tpu_custom_call.1} parent=1 // pred_check_branch
      %25 = sbr.rel (0) target = $region17
    $region16: #{tpu_custom_call.1} parent=1 // pred_region
      %26 = dma.done [#allocation3], 128
    $region17: #{tpu_custom_call.1} parent=1 // pred_fallthru
      _
    %v27 = vld [vmem:[#allocation2] sm:$0xff]
    %v29 = vcombine.high %v27, %v27
    %vm31 = vcmask 1043456
    %v32 = vsel %vm31, %v27, 0.0
    %v33 = vrot.slane %v32, 4
    %v34 = vadd.f32 %v32, %v33
    %v35 = vrot.slane %v34, 2
    %v36 = vadd.f32 %v34, %v35
    %v37 = vrot.slane %v36, 1
    %v38 = vadd.f32 %v36, %v37
    %vm39 = vcmask 519168
    %v40 = vsel %vm39, %v29, 0.0
    %v41 = vrot.slane %v40, 4
    %v42 = vadd.f32 %v40, %v41
    %v43 = vrot.slane %v42, 2
    %v44 = vadd.f32 %v42, %v43
    %v45 = vrot.slane %v44, 1
    %v46 = vadd.f32 %v44, %v45
    %v47 = vrcp.pop 4.0
    %v48 = vmul.f32 %v38, %v47
    %v49 = vmul.f32 %v46, %v47
    %v50 = vsel %vm31, %v27, -inf
    %v51 = vrot.slane %v50, 4
    %v52 = vmax.f32 %v50, %v51
    %v53 = vrot.slane %v52, 2
    %v54 = vmax.f32 %v52, %v53
    %v55 = vrot.slane %v54, 1
    %v56 = vmax.f32 %v54, %v55
    %v57 = vsel %vm39, %v29, -inf
    %v58 = vrot.slane %v57, 4
    %v59 = vmax.f32 %v57, %v58
    %v60 = vrot.slane %v59, 2
    %v61 = vmax.f32 %v59, %v60
    %v62 = vrot.slane %v61, 1
    %v63 = vmax.f32 %v61, %v62
    %v64 = vadd.f32 %v48, %v56
    %v65 = vadd.f32 %v49, %v63
    %v66 = vmul.f32 %v64, 0.5
    %v67 = vmul.f32 %v65, 0.5
    %v68 = vld [vmem:[%s2] sm:$0xf]
    %v69 = vld [vmem:[%s1] sm:$0xff]
    %71 = vset.pattern.permute.xlu0 0
    %72 = vperm.xlu0 %71, %v68
    %v73 = vpop.permute.xlu0 %72
    %v76 = vcombine.high %v69, %v69
    %v78 = vmul.f32 %v73, %v69
    %v79 = vmul.f32 %v73, %v76
    %v80 = vadd.f32 %v66, %v78
    %v81 = vadd.f32 %v67, %v79
    %v84 = vcombine.low %v80, %v81
    %vm86 = vcmask 523268
    %vm87 = vmor %vm86, %vm31
    %88 = vst.msk [vmem:[#allocation5] sm:$0xff] %vm87, %v84
    // Predicated region
    $region18: #{tpu_custom_call.1} parent=1 // pred_check
      _
    $region19: #{tpu_custom_call.1} parent=1 // pred_check_branch
      %90 = sbr.rel (0) target = $region21
    $region20: #{tpu_custom_call.1} parent=1 // pred_region
      %s92 = ssub.s32 128, 128
      %93 = vsyncadd [#allocation4], %s92
      %s95 = sshll.u32 [#allocation5], 4
      %s96 = int_to_ptr.vmem [resolvable:$true] %s95
      %98 = dma.vmem_to_hbm [thread:$0]  %s96, 128, %s3, [#allocation4]
    $region21: #{tpu_custom_call.1} parent=1 // pred_fallthru
      _
    // Predicated region
    $region22: #{tpu_custom_call.1} parent=1 // pred_check
      _
    $region23: #{tpu_custom_call.1} parent=1 // pred_check_branch
      %100 = sbr.rel (0) target = $region25
    $region24: #{tpu_custom_call.1} parent=1 // pred_region
      %101 = dma.done [#allocation4], 128
    $region25: #{tpu_custom_call.1} parent=1 // pred_fallthru
      _
    %102 = vsyncpa [#allocation3], 1
    %103 = vsyncpa [#allocation4], 1

</llo_original>
